<compile_context>
chip_gen: v7x
topology: tpu7x:2x2x1
jax: 0.10.0
libtpu: 0.0.40
codegen_flags: <defaults>
</compile_context>

<pallas_src>
import functools

import jax
import jax.numpy as jnp
from jax import lax
from jax.experimental import pallas as pl
from jax.experimental.pallas import tpu as pltpu

EPS = 1e-5


def _fused_mlp_kernel(col_offsets, batch,
                      x_cat_ref,    # SMEM (B, n_cat_cols) int32 (scalar prefetch)
                      x_cont_ref,   # VMEM (B, n_cont) f32
                      proj_ref,     # VMEM (sum_c n_categories_c, D2) f32
                      w1c_ref,      # VMEM (n_cont, D2) f32  (bn1 folded in)
                      w2_ref,       # VMEM (D2, D3) f32      (bn2 folded in)
                      b2_ref,       # VMEM (1, D3) f32       (bn2 folded in)
                      out_ref,      # VMEM (B, D3) f32
                      h_ref):       # VMEM scratch (B, D2) f32
    # Fused embedding lookup: tables were pre-projected through w1 (and the
    # lin1/bn1 bias folded into table 0), so one dynamic row read per
    # categorical column gives its full contribution to lin1's pre-activation.
    for b in range(batch):                              # tiny static batch -> unrolled
        acc = proj_ref[pl.ds(x_cat_ref[b, 0] + col_offsets[0], 1), :]
        for c in range(1, len(col_offsets)):
            acc = acc + proj_ref[pl.ds(x_cat_ref[b, c] + col_offsets[c], 1), :]
        h_ref[pl.ds(b, 1), :] = acc

    # Continuous features (bn1 already folded into w1c) + ReLU.
    # Dropout layers are identity in eval mode.
    h = h_ref[...] + jnp.dot(x_cont_ref[...], w1c_ref[...],
                             preferred_element_type=jnp.float32)
    h = jnp.maximum(h, 0.0)

    # lin2 (bn2 folded into w2/b2).
    out_ref[...] = (jnp.dot(h, w2_ref[...], preferred_element_type=jnp.float32)
                    + b2_ref[...])


def disaster_forward(x_cat, x_cont, folded):
    """x_cat: int32 [B, n_cat_cols]; x_cont: float32 [B, n_cont]."""
    B = x_cont.shape[0]
    proj, w1c, w2, b2 = folded["proj"], folded["w1c"], folded["w2"], folded["b2"]
    col_offsets = folded["col_offsets"]
    D2, D3 = w2.shape

    def full_spec(a):
        # Full-array block; index_map also receives the scalar-prefetch ref.
        return pl.BlockSpec(a.shape, lambda i, xc, _nd=a.ndim: (0,) * _nd)

    kernel = functools.partial(_fused_mlp_kernel, col_offsets, int(B))
    return pl.pallas_call(
        kernel,
        out_shape=jax.ShapeDtypeStruct((B, D3), jnp.float32),
        grid_spec=pltpu.PrefetchScalarGridSpec(
            num_scalar_prefetch=1,        # x_cat -> SMEM, read per row in kernel
            grid=(1,),                    # everything VMEM-resident in one step
            in_specs=[full_spec(x_cont), full_spec(proj), full_spec(w1c),
                      full_spec(w2), full_spec(b2)],
            out_specs=pl.BlockSpec((B, D3), lambda i, xc: (0, 0)),
            scratch_shapes=[pltpu.VMEM((B, D2), jnp.float32)]),
        # Single step -> 'arbitrary'.  If B scales, tile the batch as a
        # 'parallel' axis so both v7x TensorCores are used.
        compiler_params=pltpu.CompilerParams(
            dimension_semantics=("arbitrary",)),
    )(x_cat, x_cont, proj, w1c, w2, b2)


def fold_params(params, eps=EPS):
    """One-time (outside the hot path) folding of eval-mode BN + embedding
    projection into the linear layers."""
    tables = params["emb_tables"]
    dims = [t.shape[1] for t in tables]
    n_emb = sum(dims)
    w1, b1 = params["w1"], params["b1"]          # (D1, D2), (1, D2)
    w2, b2 = params["w2"], params["b2"]          # (D2, D3), (1, D3)

    # bn1 (eval): x_norm = x * s1 + t1
    s1 = params["bn1_g"] * lax.rsqrt(params["bn1_v"] + eps)
    t1 = params["bn1_b"] - params["bn1_m"] * s1
    w1_c = w1[n_emb:, :]
    w1c_f = s1.T * w1_c                                               # (n_cont, D2)
    bias1 = b1 + jnp.dot(t1, w1_c, preferred_element_type=jnp.float32)

    # Pre-project each embedding table through its slice of w1:
    #   emb(x)[i] @ w1_emb  ==  (emb_table @ w1_emb)[x[i]]    (eval-mode exact)
    projs, off = [], 0
    for t, d in zip(tables, dims):
        projs.append(jnp.dot(t, w1[off:off + d, :],
                             preferred_element_type=jnp.float32))
        off += d
    projs[0] = projs[0] + bias1      # fold lin1 bias (+ bn1 const) into table 0
    proj = jnp.concatenate(projs, axis=0)
    sizes = [t.shape[0] for t in tables]
    col_offsets = tuple(int(sum(sizes[:i])) for i in range(len(sizes)))

    # bn2 (eval): h_norm = h * s2 + t2, folded into lin2.
    s2 = params["bn2_g"] * lax.rsqrt(params["bn2_v"] + eps)
    t2 = params["bn2_b"] - params["bn2_m"] * s2
    w2_f = s2.T * w2
    b2_f = b2 + jnp.dot(t2, w2, preferred_element_type=jnp.float32)

    return {"proj": proj, "col_offsets": col_offsets,
            "w1c": w1c_f, "w2": w2_f, "b2": b2_f}


def reference_forward(x_cat, x_cont, params, eps=EPS):
    """Pure-JAX reference matching the PyTorch module in eval mode."""
    embs = [jnp.take(t, x_cat[:, i], axis=0)
            for i, t in enumerate(params["emb_tables"])]
    x = jnp.concatenate(embs, axis=1)
    x2 = (x_cont - params["bn1_m"]) * lax.rsqrt(params["bn1_v"] + eps)
    x2 = x2 * params["bn1_g"] + params["bn1_b"]
    x = jnp.concatenate([x, x2], axis=1)
    h = jnp.maximum(x @ params["w1"] + params["b1"], 0.0)
    h = (h - params["bn2_m"]) * lax.rsqrt(params["bn2_v"] + eps)
    h = h * params["bn2_g"] + params["bn2_b"]
    return h @ params["w2"] + params["b2"]


def init_params(key, embedding_sizes, n_cont):
    """Deterministic synthetic parameters matching the PyTorch module shapes."""
    n_emb = sum(size for _, size in embedding_sizes)
    D1 = n_emb + n_cont
    D2 = 2 * (n_emb + n_cont) // 3 + 3
    D3 = 3

    keys = jax.random.split(key, len(embedding_sizes) + 12)
    emb_tables = [jax.random.normal(keys[i], (n_cat, size), jnp.float32) * 0.1
                  for i, (n_cat, size) in enumerate(embedding_sizes)]
    k = list(keys[len(embedding_sizes):])
    return {
        "emb_tables": emb_tables,
        # Linear weights stored as [in, out] so the forward does x @ W + b.
        "w1": jax.random.normal(k[0], (D1, D2), jnp.float32) / jnp.sqrt(D1 * 1.0),
        "b1": jax.random.normal(k[1], (1, D2), jnp.float32) * 0.01,
        "w2": jax.random.normal(k[2], (D2, D3), jnp.float32) / jnp.sqrt(D2 * 1.0),
        "b2": jax.random.normal(k[3], (1, D3), jnp.float32) * 0.01,
        # Non-trivial BatchNorm1d running stats / affine so the fold is exercised.
        "bn1_g": 1.0 + 0.1 * jax.random.normal(k[4], (1, n_cont), jnp.float32),
        "bn1_b": 0.1 * jax.random.normal(k[5], (1, n_cont), jnp.float32),
        "bn1_m": 0.1 * jax.random.normal(k[6], (1, n_cont), jnp.float32),
        "bn1_v": jax.random.uniform(k[7], (1, n_cont), jnp.float32, minval=0.5, maxval=1.5),
        "bn2_g": 1.0 + 0.1 * jax.random.normal(k[8], (1, D2), jnp.float32),
        "bn2_b": 0.1 * jax.random.normal(k[9], (1, D2), jnp.float32),
        "bn2_m": 0.1 * jax.random.normal(k[10], (1, D2), jnp.float32),
        "bn2_v": jax.random.uniform(k[11], (1, D2), jnp.float32, minval=0.5, maxval=1.5),
    }


if __name__ == "__main__":
    # Columns with > 20 categories, per the module's embedded_cols filter.
    embedding_sizes = [(30, min(50, (30 + 1) // 2)),   # -> dim 15
                       (25, min(50, (25 + 1) // 2))]   # -> dim 13
    n_cont = 4
    batch = 8

    key = jax.random.PRNGKey(0)
    k_params, k_cat0, k_cat1, k_cont = jax.random.split(key, 4)

    params = init_params(k_params, embedding_sizes, n_cont)
    folded = fold_params(params)        # one-time folding, not in the hot path

    x_cat = jnp.stack(
        [jax.random.randint(k_cat0, (batch,), 0, embedding_sizes[0][0]),
         jax.random.randint(k_cat1, (batch,), 0, embedding_sizes[1][0])],
        axis=1).astype(jnp.int32)                       # [B, 2]
    x_cont = jax.random.normal(k_cont, (batch, n_cont), jnp.float32)   # [B, 4]

    out = disaster_forward(x_cat, x_cont, folded)
    jax.block_until_ready(out)

    ref = reference_forward(x_cat, x_cont, params)
    assert out.shape == (batch, 3) and out.dtype == jnp.float32
    assert jnp.allclose(out, ref, atol=1e-4, rtol=1e-4), (out, ref)
    print("KERNEL_OK")
</pallas_src>

<mosaic_0001>
module attributes {stable_mosaic.version = 11 : i64} {
  func.func @_fused_mlp_kernel(%arg0: i32, %arg1: memref<8x2xi32, #tpu.memory_space<smem>>, %arg2: memref<8x4xf32, #tpu.memory_space<vmem>>, %arg3: memref<55x24xf32, #tpu.memory_space<vmem>>, %arg4: memref<4x24xf32, #tpu.memory_space<vmem>>, %arg5: memref<24x3xf32, #tpu.memory_space<vmem>>, %arg6: memref<1x3xf32, #tpu.memory_space<vmem>>, %arg7: memref<8x3xf32, #tpu.memory_space<vmem>>, %arg8: memref<8x24xf32, #tpu.memory_space<vmem>>) attributes {dimension_semantics = [#tpu.dimension_semantics<arbitrary>], iteration_bounds = array<i64: 1>, scalar_prefetch = 1 : i64, scratch_operands = 1 : i64, tpu.core_type = #tpu.core_type<tc>, window_params = [{pipeline_mode = #tpu.pipeline_mode<synchronous>, transform_indices = @transform_0, window_bounds = array<i64: 8, 4>}, {pipeline_mode = #tpu.pipeline_mode<synchronous>, transform_indices = @transform_1, window_bounds = array<i64: 55, 24>}, {pipeline_mode = #tpu.pipeline_mode<synchronous>, transform_indices = @transform_2, window_bounds = array<i64: 4, 24>}, {pipeline_mode = #tpu.pipeline_mode<synchronous>, transform_indices = @transform_3, window_bounds = array<i64: 24, 3>}, {pipeline_mode = #tpu.pipeline_mode<synchronous>, transform_indices = @transform_4, window_bounds = array<i64: 1, 3>}, {pipeline_mode = #tpu.pipeline_mode<synchronous>, transform_indices = @transform_5, window_bounds = array<i64: 8, 3>}]} {
    %c0 = arith.constant 0 : index
    %c0_0 = arith.constant 0 : index
    %0 = memref.load %arg1[%c0, %c0_0] : memref<8x2xi32, #tpu.memory_space<smem>>
    %c0_i32 = arith.constant 0 : i32
    %1 = arith.addi %0, %c0_i32 : i32
    %2 = arith.index_cast %1 : i32 to index
    %c0_1 = arith.constant 0 : index
    %3 = vector.load %arg3[%2, %c0_1] : memref<55x24xf32, #tpu.memory_space<vmem>>, vector<1x24xf32>
    %c0_2 = arith.constant 0 : index
    %c1 = arith.constant 1 : index
    %4 = memref.load %arg1[%c0_2, %c1] : memref<8x2xi32, #tpu.memory_space<smem>>
    %c30_i32 = arith.constant 30 : i32
    %5 = arith.addi %4, %c30_i32 : i32
    %6 = arith.index_cast %5 : i32 to index
    %c0_3 = arith.constant 0 : index
    %7 = vector.load %arg3[%6, %c0_3] : memref<55x24xf32, #tpu.memory_space<vmem>>, vector<1x24xf32>
    %8 = arith.addf %3, %7 : vector<1x24xf32>
    %c0_4 = arith.constant 0 : index
    %c0_5 = arith.constant 0 : index
    %9 = vector.load %arg8[%c0_4, %c0_5] : memref<8x24xf32, #tpu.memory_space<vmem>>, vector<1x24xf32>
    tpu.vector_store %arg8[%c0_4, %c0_5], %8 {strides = array<i32>} : memref<8x24xf32, #tpu.memory_space<vmem>>, vector<1x24xf32>,
    %c1_6 = arith.constant 1 : index
    %c0_7 = arith.constant 0 : index
    %10 = memref.load %arg1[%c1_6, %c0_7] : memref<8x2xi32, #tpu.memory_space<smem>>
    %c0_i32_8 = arith.constant 0 : i32
    %11 = arith.addi %10, %c0_i32_8 : i32
    %12 = arith.index_cast %11 : i32 to index
    %c0_9 = arith.constant 0 : index
    %13 = vector.load %arg3[%12, %c0_9] : memref<55x24xf32, #tpu.memory_space<vmem>>, vector<1x24xf32>
    %c1_10 = arith.constant 1 : index
    %c1_11 = arith.constant 1 : index
    %14 = memref.load %arg1[%c1_10, %c1_11] : memref<8x2xi32, #tpu.memory_space<smem>>
    %c30_i32_12 = arith.constant 30 : i32
    %15 = arith.addi %14, %c30_i32_12 : i32
    %16 = arith.index_cast %15 : i32 to index
    %c0_13 = arith.constant 0 : index
    %17 = vector.load %arg3[%16, %c0_13] : memref<55x24xf32, #tpu.memory_space<vmem>>, vector<1x24xf32>
    %18 = arith.addf %13, %17 : vector<1x24xf32>
    %c1_14 = arith.constant 1 : index
    %c0_15 = arith.constant 0 : index
    %19 = vector.load %arg8[%c1_14, %c0_15] : memref<8x24xf32, #tpu.memory_space<vmem>>, vector<1x24xf32>
    tpu.vector_store %arg8[%c1_14, %c0_15], %18 {strides = array<i32>} : memref<8x24xf32, #tpu.memory_space<vmem>>, vector<1x24xf32>,
    %c2 = arith.constant 2 : index
    %c0_16 = arith.constant 0 : index
    %20 = memref.load %arg1[%c2, %c0_16] : memref<8x2xi32, #tpu.memory_space<smem>>
    %c0_i32_17 = arith.constant 0 : i32
    %21 = arith.addi %20, %c0_i32_17 : i32
    %22 = arith.index_cast %21 : i32 to index
    %c0_18 = arith.constant 0 : index
    %23 = vector.load %arg3[%22, %c0_18] : memref<55x24xf32, #tpu.memory_space<vmem>>, vector<1x24xf32>
    %c2_19 = arith.constant 2 : index
    %c1_20 = arith.constant 1 : index
    %24 = memref.load %arg1[%c2_19, %c1_20] : memref<8x2xi32, #tpu.memory_space<smem>>
    %c30_i32_21 = arith.constant 30 : i32
    %25 = arith.addi %24, %c30_i32_21 : i32
    %26 = arith.index_cast %25 : i32 to index
    %c0_22 = arith.constant 0 : index
    %27 = vector.load %arg3[%26, %c0_22] : memref<55x24xf32, #tpu.memory_space<vmem>>, vector<1x24xf32>
    %28 = arith.addf %23, %27 : vector<1x24xf32>
    %c2_23 = arith.constant 2 : index
    %c0_24 = arith.constant 0 : index
    %29 = vector.load %arg8[%c2_23, %c0_24] : memref<8x24xf32, #tpu.memory_space<vmem>>, vector<1x24xf32>
    tpu.vector_store %arg8[%c2_23, %c0_24], %28 {strides = array<i32>} : memref<8x24xf32, #tpu.memory_space<vmem>>, vector<1x24xf32>,
    %c3 = arith.constant 3 : index
    %c0_25 = arith.constant 0 : index
    %30 = memref.load %arg1[%c3, %c0_25] : memref<8x2xi32, #tpu.memory_space<smem>>
    %c0_i32_26 = arith.constant 0 : i32
    %31 = arith.addi %30, %c0_i32_26 : i32
    %32 = arith.index_cast %31 : i32 to index
    %c0_27 = arith.constant 0 : index
    %33 = vector.load %arg3[%32, %c0_27] : memref<55x24xf32, #tpu.memory_space<vmem>>, vector<1x24xf32>
    %c3_28 = arith.constant 3 : index
    %c1_29 = arith.constant 1 : index
    %34 = memref.load %arg1[%c3_28, %c1_29] : memref<8x2xi32, #tpu.memory_space<smem>>
    %c30_i32_30 = arith.constant 30 : i32
    %35 = arith.addi %34, %c30_i32_30 : i32
    %36 = arith.index_cast %35 : i32 to index
    %c0_31 = arith.constant 0 : index
    %37 = vector.load %arg3[%36, %c0_31] : memref<55x24xf32, #tpu.memory_space<vmem>>, vector<1x24xf32>
    %38 = arith.addf %33, %37 : vector<1x24xf32>
    %c3_32 = arith.constant 3 : index
    %c0_33 = arith.constant 0 : index
    %39 = vector.load %arg8[%c3_32, %c0_33] : memref<8x24xf32, #tpu.memory_space<vmem>>, vector<1x24xf32>
    tpu.vector_store %arg8[%c3_32, %c0_33], %38 {strides = array<i32>} : memref<8x24xf32, #tpu.memory_space<vmem>>, vector<1x24xf32>,
    %c4 = arith.constant 4 : index
    %c0_34 = arith.constant 0 : index
    %40 = memref.load %arg1[%c4, %c0_34] : memref<8x2xi32, #tpu.memory_space<smem>>
    %c0_i32_35 = arith.constant 0 : i32
    %41 = arith.addi %40, %c0_i32_35 : i32
    %42 = arith.index_cast %41 : i32 to index
    %c0_36 = arith.constant 0 : index
    %43 = vector.load %arg3[%42, %c0_36] : memref<55x24xf32, #tpu.memory_space<vmem>>, vector<1x24xf32>
    %c4_37 = arith.constant 4 : index
    %c1_38 = arith.constant 1 : index
    %44 = memref.load %arg1[%c4_37, %c1_38] : memref<8x2xi32, #tpu.memory_space<smem>>
    %c30_i32_39 = arith.constant 30 : i32
    %45 = arith.addi %44, %c30_i32_39 : i32
    %46 = arith.index_cast %45 : i32 to index
    %c0_40 = arith.constant 0 : index
    %47 = vector.load %arg3[%46, %c0_40] : memref<55x24xf32, #tpu.memory_space<vmem>>, vector<1x24xf32>
    %48 = arith.addf %43, %47 : vector<1x24xf32>
    %c4_41 = arith.constant 4 : index
    %c0_42 = arith.constant 0 : index
    %49 = vector.load %arg8[%c4_41, %c0_42] : memref<8x24xf32, #tpu.memory_space<vmem>>, vector<1x24xf32>
    tpu.vector_store %arg8[%c4_41, %c0_42], %48 {strides = array<i32>} : memref<8x24xf32, #tpu.memory_space<vmem>>, vector<1x24xf32>,
    %c5 = arith.constant 5 : index
    %c0_43 = arith.constant 0 : index
    %50 = memref.load %arg1[%c5, %c0_43] : memref<8x2xi32, #tpu.memory_space<smem>>
    %c0_i32_44 = arith.constant 0 : i32
    %51 = arith.addi %50, %c0_i32_44 : i32
    %52 = arith.index_cast %51 : i32 to index
    %c0_45 = arith.constant 0 : index
    %53 = vector.load %arg3[%52, %c0_45] : memref<55x24xf32, #tpu.memory_space<vmem>>, vector<1x24xf32>
    %c5_46 = arith.constant 5 : index
    %c1_47 = arith.constant 1 : index
    %54 = memref.load %arg1[%c5_46, %c1_47] : memref<8x2xi32, #tpu.memory_space<smem>>
    %c30_i32_48 = arith.constant 30 : i32
    %55 = arith.addi %54, %c30_i32_48 : i32
    %56 = arith.index_cast %55 : i32 to index
    %c0_49 = arith.constant 0 : index
    %57 = vector.load %arg3[%56, %c0_49] : memref<55x24xf32, #tpu.memory_space<vmem>>, vector<1x24xf32>
    %58 = arith.addf %53, %57 : vector<1x24xf32>
    %c5_50 = arith.constant 5 : index
    %c0_51 = arith.constant 0 : index
    %59 = vector.load %arg8[%c5_50, %c0_51] : memref<8x24xf32, #tpu.memory_space<vmem>>, vector<1x24xf32>
    tpu.vector_store %arg8[%c5_50, %c0_51], %58 {strides = array<i32>} : memref<8x24xf32, #tpu.memory_space<vmem>>, vector<1x24xf32>,
    %c6 = arith.constant 6 : index
    %c0_52 = arith.constant 0 : index
    %60 = memref.load %arg1[%c6, %c0_52] : memref<8x2xi32, #tpu.memory_space<smem>>
    %c0_i32_53 = arith.constant 0 : i32
    %61 = arith.addi %60, %c0_i32_53 : i32
    %62 = arith.index_cast %61 : i32 to index
    %c0_54 = arith.constant 0 : index
    %63 = vector.load %arg3[%62, %c0_54] : memref<55x24xf32, #tpu.memory_space<vmem>>, vector<1x24xf32>
    %c6_55 = arith.constant 6 : index
    %c1_56 = arith.constant 1 : index
    %64 = memref.load %arg1[%c6_55, %c1_56] : memref<8x2xi32, #tpu.memory_space<smem>>
    %c30_i32_57 = arith.constant 30 : i32
    %65 = arith.addi %64, %c30_i32_57 : i32
    %66 = arith.index_cast %65 : i32 to index
    %c0_58 = arith.constant 0 : index
    %67 = vector.load %arg3[%66, %c0_58] : memref<55x24xf32, #tpu.memory_space<vmem>>, vector<1x24xf32>
    %68 = arith.addf %63, %67 : vector<1x24xf32>
    %c6_59 = arith.constant 6 : index
    %c0_60 = arith.constant 0 : index
    %69 = vector.load %arg8[%c6_59, %c0_60] : memref<8x24xf32, #tpu.memory_space<vmem>>, vector<1x24xf32>
    tpu.vector_store %arg8[%c6_59, %c0_60], %68 {strides = array<i32>} : memref<8x24xf32, #tpu.memory_space<vmem>>, vector<1x24xf32>,
    %c7 = arith.constant 7 : index
    %c0_61 = arith.constant 0 : index
    %70 = memref.load %arg1[%c7, %c0_61] : memref<8x2xi32, #tpu.memory_space<smem>>
    %c0_i32_62 = arith.constant 0 : i32
    %71 = arith.addi %70, %c0_i32_62 : i32
    %72 = arith.index_cast %71 : i32 to index
    %c0_63 = arith.constant 0 : index
    %73 = vector.load %arg3[%72, %c0_63] : memref<55x24xf32, #tpu.memory_space<vmem>>, vector<1x24xf32>
    %c7_64 = arith.constant 7 : index
    %c1_65 = arith.constant 1 : index
    %74 = memref.load %arg1[%c7_64, %c1_65] : memref<8x2xi32, #tpu.memory_space<smem>>
    %c30_i32_66 = arith.constant 30 : i32
    %75 = arith.addi %74, %c30_i32_66 : i32
    %76 = arith.index_cast %75 : i32 to index
    %c0_67 = arith.constant 0 : index
    %77 = vector.load %arg3[%76, %c0_67] : memref<55x24xf32, #tpu.memory_space<vmem>>, vector<1x24xf32>
    %78 = arith.addf %73, %77 : vector<1x24xf32>
    %c7_68 = arith.constant 7 : index
    %c0_69 = arith.constant 0 : index
    %79 = vector.load %arg8[%c7_68, %c0_69] : memref<8x24xf32, #tpu.memory_space<vmem>>, vector<1x24xf32>
    tpu.vector_store %arg8[%c7_68, %c0_69], %78 {strides = array<i32>} : memref<8x24xf32, #tpu.memory_space<vmem>>, vector<1x24xf32>,
    %c0_70 = arith.constant 0 : index
    %c0_71 = arith.constant 0 : index
    %80 = vector.load %arg8[%c0_70, %c0_71] : memref<8x24xf32, #tpu.memory_space<vmem>>, vector<8x24xf32>
    %c0_72 = arith.constant 0 : index
    %c0_73 = arith.constant 0 : index
    %81 = vector.load %arg2[%c0_72, %c0_73] : memref<8x4xf32, #tpu.memory_space<vmem>>, vector<8x4xf32>
    %c0_74 = arith.constant 0 : index
    %c0_75 = arith.constant 0 : index
    %82 = vector.load %arg4[%c0_74, %c0_75] : memref<4x24xf32, #tpu.memory_space<vmem>>, vector<4x24xf32>
    %cst = arith.constant dense<0.000000e+00> : vector<8x24xf32>
    %83 = tpu.matmul %81, %82, %cst {dimension_numbers = #tpu.dot_dimension_numbers<[1], [0], [0], [1], [0, 0, 1, 1], [], []>} : vector<8x4xf32>, vector<4x24xf32>, vector<8x24xf32> -> vector<8x24xf32>
    %84 = arith.addf %80, %83 : vector<8x24xf32>
    %cst_76 = arith.constant 0.000000e+00 : f32
    %85 = vector.broadcast %cst_76 : f32 to vector<8x24xf32>
    %86 = arith.maximumf %84, %85 : vector<8x24xf32>
    %c0_77 = arith.constant 0 : index
    %c0_78 = arith.constant 0 : index
    %87 = vector.load %arg5[%c0_77, %c0_78] : memref<24x3xf32, #tpu.memory_space<vmem>>, vector<24x3xf32>
    %cst_79 = arith.constant dense<0.000000e+00> : vector<8x3xf32>
    %88 = tpu.matmul %86, %87, %cst_79 {dimension_numbers = #tpu.dot_dimension_numbers<[1], [0], [0], [1], [0, 0, 1, 1], [], []>} : vector<8x24xf32>, vector<24x3xf32>, vector<8x3xf32> -> vector<8x3xf32>
    %c0_80 = arith.constant 0 : index
    %c0_81 = arith.constant 0 : index
    %89 = vector.load %arg6[%c0_80, %c0_81] : memref<1x3xf32, #tpu.memory_space<vmem>>, vector<1x3xf32>
    %90 = vector.broadcast %89 : vector<1x3xf32> to vector<8x3xf32>
    %91 = arith.addf %88, %90 : vector<8x3xf32>
    %c0_82 = arith.constant 0 : index
    %c0_83 = arith.constant 0 : index
    %92 = vector.load %arg7[%c0_82, %c0_83] : memref<8x3xf32, #tpu.memory_space<vmem>>, vector<8x3xf32>
    tpu.vector_store %arg7[%c0_82, %c0_83], %91 {strides = array<i32>} : memref<8x3xf32, #tpu.memory_space<vmem>>, vector<8x3xf32>,
    return
  }
  func.func @transform_0(%arg0: i32, %arg1: memref<8x2xi32, #tpu.memory_space<smem>>) -> (i32, i32) {
    %c0_i32 = arith.constant 0 : i32
    %c0_i32_0 = arith.constant 0 : i32
    %c0_i32_1 = arith.constant 0 : i32
    return %c0_i32, %c0_i32_0 : i32, i32
  }
  func.func @transform_1(%arg0: i32, %arg1: memref<8x2xi32, #tpu.memory_space<smem>>) -> (i32, i32) {
    %c0_i32 = arith.constant 0 : i32
    %c0_i32_0 = arith.constant 0 : i32
    %c0_i32_1 = arith.constant 0 : i32
    return %c0_i32, %c0_i32_0 : i32, i32
  }
  func.func @transform_2(%arg0: i32, %arg1: memref<8x2xi32, #tpu.memory_space<smem>>) -> (i32, i32) {
    %c0_i32 = arith.constant 0 : i32
    %c0_i32_0 = arith.constant 0 : i32
    %c0_i32_1 = arith.constant 0 : i32
    return %c0_i32, %c0_i32_0 : i32, i32
  }
  func.func @transform_3(%arg0: i32, %arg1: memref<8x2xi32, #tpu.memory_space<smem>>) -> (i32, i32) {
    %c0_i32 = arith.constant 0 : i32
    %c0_i32_0 = arith.constant 0 : i32
    %c0_i32_1 = arith.constant 0 : i32
    return %c0_i32, %c0_i32_0 : i32, i32
  }
  func.func @transform_4(%arg0: i32, %arg1: memref<8x2xi32, #tpu.memory_space<smem>>) -> (i32, i32) {
    %c0_i32 = arith.constant 0 : i32
    %c0_i32_0 = arith.constant 0 : i32
    %c0_i32_1 = arith.constant 0 : i32
    return %c0_i32, %c0_i32_0 : i32, i32
  }
  func.func @transform_5(%arg0: i32, %arg1: memref<8x2xi32, #tpu.memory_space<smem>>) -> (i32, i32) {
    %c0_i32 = arith.constant 0 : i32
    %c0_i32_0 = arith.constant 0 : i32
    %c0_i32_1 = arith.constant 0 : i32
    return %c0_i32, %c0_i32_0 : i32, i32
  }
}

</mosaic_0001>

<llo_original>
// kernel: tpu_custom_call.1
$region0: #{tpu_custom_call.1}
  #allocation0 [shape = 'u32[]', space=smem, size = 0x4, offset = 0x4, fixed_abs, tag = 'smem constant byte address 0x4 - core index']
  #allocation1 [shape = 'u32[144,128]{1,0:T(1,128)}', space=vmem, size = 0x12000, scoped, tag = 'internal scratch']
  #allocation2 [shape = 'f32[8,24]{1,0:T(8,128)}', space=vmem, size = 0x1000, scoped, tag = 'scratch operand']
  #allocation3 [shape = 's32[1]{0}', space=sflag, size = 0x4, scoped, tag = 'scoped memory for tpu_custom_call.1']
  #allocation4 [shape = 'u8[4096]{0}', space=smem, size = 0x1000, scoped, tag = 'prefetched SMEM operand 0']
  %s0 = inlined_call_operand.vmem [shape: s32[8,2], index: 0, kind: input, shape index: {}]
  %s1 = inlined_call_operand.vmem [shape: f32[8,4], index: 1, kind: input, shape index: {}]
  %s2 = inlined_call_operand.vmem [shape: f32[55,24], index: 2, kind: input, shape index: {}]
  %s3 = inlined_call_operand.vmem [shape: f32[4,24], index: 3, kind: input, shape index: {}]
  %s4 = inlined_call_operand.vmem [shape: f32[24,3], index: 4, kind: input, shape index: {}]
  %s5 = inlined_call_operand.vmem [shape: f32[1,3], index: 5, kind: input, shape index: {}]
  %s6 = inlined_call_operand.vmem [shape: f32[8,3], index: 6, kind: output, shape index: {}]
  %s7 = sld [smem:[#allocation0]]
  $region30: #{tpu_custom_call.1} parent=0
    _
  %s9 = ssub.s32 1, %s7
  %s10 = scalar_select 0, %s9, %s7
  %s11 = sshll.u32 %s0, 4
  %s12 = int_to_ptr.vmem [resolvable:$true] %s11
  %14 = dma.vmem_to_smem %s12, 128, [#allocation4], [#allocation3]
  %15 = dma.done [#allocation3], 128
  %16 = sfence
  // Predicated region
  $region2: #{tpu_custom_call.1} parent=0 // pred_check
    _
  $region3: #{tpu_custom_call.1} parent=0 // pred_check_branch
    %18 = sbr.rel (0) target = $region5
  $region4: #{tpu_custom_call.1} parent=0 // pred_region
    _
  $region5: #{tpu_custom_call.1} parent=0 // pred_fallthru
    _
  // Predicated region
  $region6: #{tpu_custom_call.1} parent=0 // pred_check
    _
  $region7: #{tpu_custom_call.1} parent=0 // pred_check_branch
    %20 = sbr.rel (0) target = $region9
  $region8: #{tpu_custom_call.1} parent=0 // pred_region
    _
  $region9: #{tpu_custom_call.1} parent=0 // pred_fallthru
    _
  // Predicated region
  $region10: #{tpu_custom_call.1} parent=0 // pred_check
    _
  $region11: #{tpu_custom_call.1} parent=0 // pred_check_branch
    %22 = sbr.rel (0) target = $region13
  $region12: #{tpu_custom_call.1} parent=0 // pred_region
    _
  $region13: #{tpu_custom_call.1} parent=0 // pred_fallthru
    _
  // Predicated region
  $region14: #{tpu_custom_call.1} parent=0 // pred_check
    _
  $region15: #{tpu_custom_call.1} parent=0 // pred_check_branch
    %24 = sbr.rel (0) target = $region17
  $region16: #{tpu_custom_call.1} parent=0 // pred_region
    _
  $region17: #{tpu_custom_call.1} parent=0 // pred_fallthru
    _
  // Predicated region
  $region18: #{tpu_custom_call.1} parent=0 // pred_check
    _
  $region19: #{tpu_custom_call.1} parent=0 // pred_check_branch
    %26 = sbr.rel (0) target = $region21
  $region20: #{tpu_custom_call.1} parent=0 // pred_region
    _
  $region21: #{tpu_custom_call.1} parent=0 // pred_fallthru
    _
  %s27 = sld [smem:[#allocation4]]
  %s28 = scalar_lea.vmem %s2, %s27
  %v29 = vld [vmem:[%s28] sm:$0x1]
  %s30 = sld [smem:[#allocation4 + $0x1]]
  %s31 = sadd.s32 %s30, 30
  %s32 = scalar_lea.vmem %s2, %s31
  %v33 = vld [vmem:[%s32] sm:$0x1]
  %v34 = vadd.f32 %v29, %v33
  %vm35 = vcmask 188416
  %36 = vst.msk [vmem:[#allocation2] sm:$0x1] %vm35, %v34
  %s37 = sld [smem:[#allocation4 + $0x80]]
  %s38 = scalar_lea.vmem %s2, %s37
  %v39 = vld [vmem:[%s38] sm:$0x1]
  %s40 = sld [smem:[#allocation4 + $0x81]]
  %s41 = sadd.s32 %s40, 30
  %s42 = scalar_lea.vmem %s2, %s41
  %v43 = vld [vmem:[%s42] sm:$0x1]
  %v44 = vadd.f32 %v39, %v43
  %45 = vst.msk [vmem:[#allocation2 + $0x1] sm:$0x1] %vm35, %v44
  %s46 = sld [smem:[#allocation4 + $0x100]]
  %s47 = scalar_lea.vmem %s2, %s46
  %v48 = vld [vmem:[%s47] sm:$0x1]
  %s49 = sld [smem:[#allocation4 + $0x101]]
  %s50 = sadd.s32 %s49, 30
  %s51 = scalar_lea.vmem %s2, %s50
  %v52 = vld [vmem:[%s51] sm:$0x1]
  %v53 = vadd.f32 %v48, %v52
  %54 = vst.msk [vmem:[#allocation2 + $0x2] sm:$0x1] %vm35, %v53
  %s55 = sld [smem:[#allocation4 + $0x180]]
  %s56 = scalar_lea.vmem %s2, %s55
  %v57 = vld [vmem:[%s56] sm:$0x1]
  %s58 = sld [smem:[#allocation4 + $0x181]]
  %s59 = sadd.s32 %s58, 30
  %s60 = scalar_lea.vmem %s2, %s59
  %v61 = vld [vmem:[%s60] sm:$0x1]
  %v62 = vadd.f32 %v57, %v61
  %63 = vst.msk [vmem:[#allocation2 + $0x3] sm:$0x1] %vm35, %v62
  %s64 = sld [smem:[#allocation4 + $0x200]]
  %s65 = scalar_lea.vmem %s2, %s64
  %v66 = vld [vmem:[%s65] sm:$0x1]
  %s67 = sld [smem:[#allocation4 + $0x201]]
  %s68 = sadd.s32 %s67, 30
  %s69 = scalar_lea.vmem %s2, %s68
  %v70 = vld [vmem:[%s69] sm:$0x1]
  %v71 = vadd.f32 %v66, %v70
  %72 = vst.msk [vmem:[#allocation2 + $0x4] sm:$0x1] %vm35, %v71
  %s73 = sld [smem:[#allocation4 + $0x280]]
  %s74 = scalar_lea.vmem %s2, %s73
  %v75 = vld [vmem:[%s74] sm:$0x1]
  %s76 = sld [smem:[#allocation4 + $0x281]]
  %s77 = sadd.s32 %s76, 30
  %s78 = scalar_lea.vmem %s2, %s77
  %v79 = vld [vmem:[%s78] sm:$0x1]
  %v80 = vadd.f32 %v75, %v79
  %81 = vst.msk [vmem:[#allocation2 + $0x5] sm:$0x1] %vm35, %v80
  %s82 = sld [smem:[#allocation4 + $0x300]]
  %s83 = scalar_lea.vmem %s2, %s82
  %v84 = vld [vmem:[%s83] sm:$0x1]
  %s85 = sld [smem:[#allocation4 + $0x301]]
  %s86 = sadd.s32 %s85, 30
  %s87 = scalar_lea.vmem %s2, %s86
  %v88 = vld [vmem:[%s87] sm:$0x1]
  %v89 = vadd.f32 %v84, %v88
  %90 = vst.msk [vmem:[#allocation2 + $0x6] sm:$0x1] %vm35, %v89
  %s91 = sld [smem:[#allocation4 + $0x380]]
  %s92 = scalar_lea.vmem %s2, %s91
  %v93 = vld [vmem:[%s92] sm:$0x1]
  %s94 = sld [smem:[#allocation4 + $0x381]]
  %s95 = sadd.s32 %s94, 30
  %s96 = scalar_lea.vmem %s2, %s95
  %v97 = vld [vmem:[%s96] sm:$0x1]
  %v98 = vadd.f32 %v93, %v97
  %99 = vst.msk [vmem:[#allocation2 + $0x7] sm:$0x1] %vm35, %v98
  %v100 = vld [vmem:[#allocation2] sm:$0xff]
  %v101 = vld [vmem:[%s1] sm:$0xff]
  %v102 = vld [vmem:[%s3] sm:$0xf]
  %vm103 = vcmask 31744
  %v105 = vsel %vm103, %v101, 0
  %vm107 = vcmask 1043456
  %v109 = vsel %vm107, %v102, 0
  %111 = vmatprep.subr.mxu0 0.0
  %112 = vmatpush1.msra.mxu0 %v109
  %113 = vmatprep.subr.mxu0 0.0
  %114 = vmatpush1.msra.mxu0 0.0
  %115 = vmatprep.subr.mxu0 0.0
  %116 = vmatpush1.msra.mxu0 0.0
  %117 = vmatprep.subr.mxu0 0.0
  %118 = vmatpush1.msra.mxu0 0.0
  %119 = vmatprep.subr.mxu0 0.0
  %120 = vmatpush1.msra.mxu0 0.0
  %121 = vmatprep.subr.mxu0 0.0
  %122 = vmatpush1.msra.mxu0 0.0
  %123 = vmatprep.subr.mxu0 0.0
  %124 = vmatpush1.msra.mxu0 0.0
  %125 = vmatprep.subr.mxu0 0.0
  %126 = vmatpush1.msra.mxu0 0.0
  %127 = vmatprep.subr.mxu0 0.0
  %128 = vmatpush1.msra.mxu0 0.0
  %129 = vmatprep.subr.mxu0 0.0
  %130 = vmatpush1.msra.mxu0 0.0
  %131 = vmatprep.subr.mxu0 0.0
  %132 = vmatpush1.msra.mxu0 0.0
  %133 = vmatprep.subr.mxu0 0.0
  %134 = vmatpush1.msra.mxu0 0.0
  %135 = vmatprep.subr.mxu0 0.0
  %136 = vmatpush1.msra.mxu0 0.0
  %137 = vmatprep.subr.mxu0 0.0
  %138 = vmatpush1.msra.mxu0 0.0
  %139 = vmatprep.subr.mxu0 0.0
  %140 = vmatpush1.msra.mxu0 0.0
  %141 = vmatprep.subr.mxu0 0.0
  %142 = vmatpush1.msra.mxu0 0.0
  %143 = vmatprep.subr.mxu0 0.0
  %144 = vmatpush1.msra.mxu0 0.0
  %145 = vmatprep.subr.mxu0 0.0
  %146 = vmatpush1.msra.mxu0 0.0
  %147 = vmatprep.subr.mxu0 0.0
  %148 = vmatpush1.msra.mxu0 0.0
  %149 = vmatprep.subr.mxu0 0.0
  %150 = vmatpush1.msra.mxu0 0.0
  %151 = vmatprep.subr.mxu0 0.0
  %152 = vmatpush1.msra.mxu0 0.0
  %153 = vmatprep.subr.mxu0 0.0
  %154 = vmatpush1.msra.mxu0 0.0
  %155 = vmatprep.subr.mxu0 0.0
  %156 = vmatpush1.msra.mxu0 0.0
  %157 = vmatprep.subr.mxu0 0.0
  %158 = vmatpush1.msra.mxu0 0.0
  %159 = vmatprep.subr.mxu0 0.0
  %160 = vmatpush1.msra.mxu0 0.0
  %161 = vmatprep.subr.mxu0 0.0
  %162 = vmatpush1.msra.mxu0 0.0
  %163 = vmatprep.subr.mxu0 0.0
  %164 = vmatpush1.msra.mxu0 0.0
  %165 = vmatprep.subr.mxu0 0.0
  %166 = vmatpush1.msra.mxu0 0.0
  %167 = vmatprep.subr.mxu0 0.0
  %168 = vmatpush1.msra.mxu0 0.0
  %169 = vmatprep.subr.mxu0 0.0
  %170 = vmatpush1.msra.mxu0 0.0
  %171 = vmatprep.subr.mxu0 0.0
  %172 = vmatpush1.msra.mxu0 0.0
  %173 = vmatprep.subr.mxu0 0.0
  %174 = vmatpush1.msra.mxu0 0.0
  %175 = vmatprep.mubr.f32.mxu0 0.0
  %176 = vmatmul.mubr.f32.gmra.mrb[0].mxu0 %v105
  %v177 = vpop.f32.mrb[0].mxu0
  %v178 = vadd.f32 0.0, %v177
  %v179 = vpop.f32.mrb[0].mxu0
  %180 = vdwg.mxu0
  %v181 = vadd.f32 %v100, %v178
  %v182 = vmax.f32 %v181, 0.0
  %v183 = vld [vmem:[%s4] sm:$0xff]
  %v184 = vld [vmem:[%s4 + $0x8] sm:$0xff]
  %v185 = vld [vmem:[%s4 + $0x10] sm:$0xff]
  %v186 = vld [vmem:[%s5] sm:$0x1]
  %v188 = vlaneseq
  %v189 = vshrl.u32 %v188, 7
  %v190 = vsub.s32 0, %v189
  %v191 = vrot.slane %v186, %v190
  %vm193 = vcmask 195584
  %v195 = vsel %vm193, %v182, 0
  %197 = vmatprep.subr.mxu0 0.0
  %198 = vmatpush1.msra.mxu0 %v183
  %199 = vmatprep.subr.mxu0 0.0
  %200 = vmatpush1.msra.mxu0 %v184
  %201 = vmatprep.subr.mxu0 0.0
  %202 = vmatpush1.msra.mxu0 %v185
  %203 = vmatprep.subr.mxu0 0.0
  %204 = vmatpush1.msra.mxu0 0.0
  %205 = vmatprep.subr.mxu0 0.0
  %206 = vmatpush1.msra.mxu0 0.0
  %207 = vmatprep.subr.mxu0 0.0
  %208 = vmatpush1.msra.mxu0 0.0
  %209 = vmatprep.subr.mxu0 0.0
  %210 = vmatpush1.msra.mxu0 0.0
  %211 = vmatprep.subr.mxu0 0.0
  %212 = vmatpush1.msra.mxu0 0.0
  %213 = vmatprep.subr.mxu0 0.0
  %214 = vmatpush1.msra.mxu0 0.0
  %215 = vmatprep.subr.mxu0 0.0
  %216 = vmatpush1.msra.mxu0 0.0
  %217 = vmatprep.subr.mxu0 0.0
  %218 = vmatpush1.msra.mxu0 0.0
  %219 = vmatprep.subr.mxu0 0.0
  %220 = vmatpush1.msra.mxu0 0.0
  %221 = vmatprep.subr.mxu0 0.0
  %222 = vmatpush1.msra.mxu0 0.0
  %223 = vmatprep.subr.mxu0 0.0
  %224 = vmatpush1.msra.mxu0 0.0
  %225 = vmatprep.subr.mxu0 0.0
  %226 = vmatpush1.msra.mxu0 0.0
  %227 = vmatprep.subr.mxu0 0.0
  %228 = vmatpush1.msra.mxu0 0.0
  %229 = vmatprep.subr.mxu0 0.0
  %230 = vmatpush1.msra.mxu0 0.0
  %231 = vmatprep.subr.mxu0 0.0
  %232 = vmatpush1.msra.mxu0 0.0
  %233 = vmatprep.subr.mxu0 0.0
  %234 = vmatpush1.msra.mxu0 0.0
  %235 = vmatprep.subr.mxu0 0.0
  %236 = vmatpush1.msra.mxu0 0.0
  %237 = vmatprep.subr.mxu0 0.0
  %238 = vmatpush1.msra.mxu0 0.0
  %239 = vmatprep.subr.mxu0 0.0
  %240 = vmatpush1.msra.mxu0 0.0
  %241 = vmatprep.subr.mxu0 0.0
  %242 = vmatpush1.msra.mxu0 0.0
  %243 = vmatprep.subr.mxu0 0.0
  %244 = vmatpush1.msra.mxu0 0.0
  %245 = vmatprep.subr.mxu0 0.0
  %246 = vmatpush1.msra.mxu0 0.0
  %247 = vmatprep.subr.mxu0 0.0
  %248 = vmatpush1.msra.mxu0 0.0
  %249 = vmatprep.subr.mxu0 0.0
  %250 = vmatpush1.msra.mxu0 0.0
  %251 = vmatprep.subr.mxu0 0.0
  %252 = vmatpush1.msra.mxu0 0.0
  %253 = vmatprep.subr.mxu0 0.0
  %254 = vmatpush1.msra.mxu0 0.0
  %255 = vmatprep.subr.mxu0 0.0
  %256 = vmatpush1.msra.mxu0 0.0
  %257 = vmatprep.subr.mxu0 0.0
  %258 = vmatpush1.msra.mxu0 0.0
  %259 = vmatprep.subr.mxu0 0.0
  %260 = vmatpush1.msra.mxu0 0.0
  %261 = vmatprep.mubr.f32.mxu0 0.0
  %262 = vmatmul.mubr.f32.gmra.mrb[0].mxu0 %v195
  %v263 = vpop.f32.mrb[0].mxu0
  %v264 = vadd.f32 %v191, %v263
  %v265 = vpop.f32.mrb[0].mxu0
  %266 = vdwg.mxu0
  %vm267 = vcmask 23552
  %268 = vst.msk [vmem:[%s6] sm:$0xff] %vm267, %v264
  // Predicated region
  $region22: #{tpu_custom_call.1} parent=0 // pred_check
    _
  $region23: #{tpu_custom_call.1} parent=0 // pred_check_branch
    %270 = sbr.rel (0) target = $region25
  $region24: #{tpu_custom_call.1} parent=0 // pred_region
    _
  $region25: #{tpu_custom_call.1} parent=0 // pred_fallthru
    _
  // Predicated region
  $region26: #{tpu_custom_call.1} parent=0 // pred_check
    _
  $region27: #{tpu_custom_call.1} parent=0 // pred_check_branch
    %272 = sbr.rel (0) target = $region29
  $region28: #{tpu_custom_call.1} parent=0 // pred_region
    _
  $region29: #{tpu_custom_call.1} parent=0 // pred_fallthru
    _

</llo_original>
